<compile_context>
chip_gen: v5e
topology: v5e:2x2
jax: 0.10.0
libtpu: 0.0.40
codegen_flags: <defaults>
</compile_context>

<pallas_src>
import functools

import numpy as np
import jax
import jax.numpy as jnp
from jax.experimental import pallas as pl
from jax.experimental.pallas import tpu as pltpu


def _vmem_capacity_bytes():
    """Physical VMEM of the local TPU generation; conservative fallback."""
    try:
        return int(pltpu.get_tpu_info().vmem_capacity_bytes)
    except Exception:
        return 64 << 20   # v7x has the smallest VMEM (64 MiB); safe everywhere.


def _choose_batch_chunk(B, NT, itemsize, min_steps=4):
    """Pick a batch chunk bc (divisor of B; multiple of 8 or == B).

    Budget is in PADDED VMEM bytes: a (bc, NT) block occupies
    (ceil(bc/8)*8, ceil(NT/128)*128) * itemsize, and both the input and output
    blocks are double-buffered by the auto-pipeline.  Prefer chunks that give
    at least `min_steps` grid steps (pipelined read/compute/write overlap and
    dual-TensorCore sharding on v7x), then take the largest such chunk.
    """
    lane = pl.cdiv(NT, 128) * 128
    budget = int(0.6 * _vmem_capacity_bytes())      # headroom: consts, compiler scratch

    def padded_bytes(bc):
        rows = pl.cdiv(bc, 8) * 8
        return 2 * 2 * rows * lane * itemsize       # 2 buffers x (input + output)

    cands = sorted({d for d in range(8, B + 1, 8) if B % d == 0} | {B})
    fitting = [d for d in cands if padded_bytes(d) <= budget]
    if not fitting:
        return min(cands)                           # rely on vmem_limit headroom
    # Maximize pipelining up to min_steps, then block size.
    return max(fitting, key=lambda d: (min(B // d, min_steps), d))


def _group_mean_matrix(N, T, norm_axis):
    """(N*T, N*T) constant A with A[j, i] = 1/C iff i and j share a norm group.

    norm_axis == 'nodes' (type 'T'): groups share the same hour t = i % T, C = N.
    norm_axis == 'hours' (type 'S'): groups share the same node n = i // T, C = T.
    dot(e, A) == per-group mean of e, already broadcast back to every element.
    """
    idx = np.arange(N * T)
    if norm_axis == "nodes":
        grp, inv_c = idx % T, 1.0 / N
    else:
        grp, inv_c = idx // T, 1.0 / T
    a = (grp[:, None] == grp[None, :]).astype(np.float32) * np.float32(inv_c)
    return jnp.asarray(a)


def _embed_layernorm_kernel(x_ref, c_ref, a_ref, o_ref, *, eps):
    """Fused positional-embedding add + grouped LayerNorm on a lane-dense block.

    x_ref: (bc, NT)  batch chunk of x, (n, t) flattened to n*T + t on the lane axis
    c_ref: (3, NT)   row 0 = flattened pos-embedding, row 1 = gamma, row 2 = beta (f32)
    a_ref: (NT, NT)  constant group-averaging matrix (see _group_mean_matrix)
    o_ref: (bc, NT)  output in the input dtype
    """
    f32 = jnp.float32
    e = x_ref[...].astype(f32) + c_ref[0:1, :]                 # f32 accumulation
    a = a_ref[...]
    # Per-group mean / variance via the otherwise-idle MXU; HIGHEST keeps f32 accuracy.
    mean = jnp.dot(e, a, preferred_element_type=f32,
                   precision=jax.lax.Precision.HIGHEST)
    centered = e - mean
    var = jnp.dot(centered * centered, a, preferred_element_type=f32,
                  precision=jax.lax.Precision.HIGHEST)
    inv = jax.lax.rsqrt(var + eps)                              # EUP slot
    o_ref[...] = (centered * (inv * c_ref[1:2, :]) + c_ref[2:3, :]).astype(o_ref.dtype)


def _embed_layernorm_flat(x_flat, consts, avg_mat):
    """x_flat: (B, N*T) float dtype; consts: (3, N*T) f32; avg_mat: (N*T, N*T) f32."""
    B, NT = x_flat.shape
    bc = _choose_batch_chunk(B, NT, jnp.dtype(x_flat.dtype).itemsize)
    kernel = functools.partial(_embed_layernorm_kernel, eps=1e-5)
    return pl.pallas_call(
        kernel,
        out_shape=jax.ShapeDtypeStruct((B, NT), x_flat.dtype),
        grid_spec=pltpu.PrefetchScalarGridSpec(
            num_scalar_prefetch=0,
            grid=(B // bc,),
            in_specs=[
                pl.BlockSpec((bc, NT), lambda i: (i, 0)),   # streamed x chunk
                pl.BlockSpec((3, NT), lambda i: (0, 0)),    # w/gamma/beta (resident, 1 DMA)
                pl.BlockSpec((NT, NT), lambda i: (0, 0)),   # averaging matrix (resident)
            ],
            out_specs=pl.BlockSpec((bc, NT), lambda i: (i, 0)),
        ),
        compiler_params=pltpu.CompilerParams(
            dimension_semantics=("parallel",),
            vmem_limit_bytes=int(0.75 * _vmem_capacity_bytes()),
        ),
    )(x_flat, consts, avg_mat)


def init_embedding_params(key, num_of_hour, nodes):
    """Deterministic parameter init mirroring nn.Embedding (N(0,1)) and LayerNorm."""
    k_t, k_s = jax.random.split(key)
    return {
        # pos_TEmbedding.weight : (num_of_hour, nodes)
        "W_T": jax.random.normal(k_t, (num_of_hour, nodes), jnp.float32),
        # pos_SEmbedding.weight : (nodes, num_of_hour)
        "W_S": jax.random.normal(k_s, (nodes, num_of_hour), jnp.float32),
        # Tnorm (over nodes), Snorm (over num_of_hour)
        "Tnorm_gamma": jnp.ones((nodes,), jnp.float32),
        "Tnorm_beta": jnp.zeros((nodes,), jnp.float32),
        "Snorm_gamma": jnp.ones((num_of_hour,), jnp.float32),
        "Snorm_beta": jnp.zeros((num_of_hour,), jnp.float32),
    }


@functools.partial(jax.jit, static_argnames=("etype",))
def embedding_forward(x, params, etype):
    """x: (B, 1, N, T); returns (B, 1, N, T) in x.dtype.

    Pass bf16 x on v6e/v7x for ~2x on this HBM-bandwidth-bound op (mean/var
    stay f32 inside the kernel); f32 x reproduces the PyTorch module exactly
    (use f32 on v5e).
    """
    B, _, N, T = x.shape
    NT = N * T
    x_flat = x[:, 0].reshape(B, NT)                       # contiguous reshape: lane-dense, free
    if etype == "T":
        # e[.., n*T+t] = x[b,n,t] + W_T[t,n]; norm over n (same t), gamma/beta over n.
        w_flat = jnp.transpose(params["W_T"]).reshape(NT)  # only the tiny (T,N) weight moves
        g_flat = jnp.repeat(params["Tnorm_gamma"], T)      # gamma[n] at index n*T + t
        b_flat = jnp.repeat(params["Tnorm_beta"], T)
        avg = _group_mean_matrix(N, T, "nodes")
    else:
        # e[.., n*T+t] = x[b,n,t] + W_S[n,t]; norm over t (same n), gamma/beta over t.
        w_flat = params["W_S"].reshape(NT)
        g_flat = jnp.tile(params["Snorm_gamma"], N)        # gamma[t] at index n*T + t
        b_flat = jnp.tile(params["Snorm_beta"], N)
        avg = _group_mean_matrix(N, T, "hours")
    consts = jnp.stack([w_flat, g_flat, b_flat]).astype(jnp.float32)   # (3, NT)
    out_flat = _embed_layernorm_flat(x_flat, consts, avg)
    return out_flat.reshape(B, 1, N, T)


if __name__ == "__main__":
    # Small shapes consistent with the module: B=2, F=1, N(nodes)=16, T(num_of_hour)=8
    B, N, T = 2, 16, 8
    key = jax.random.PRNGKey(0)
    kx, kp = jax.random.split(key)

    x = jax.random.normal(kx, (B, 1, N, T), jnp.float32)
    params = init_embedding_params(kp, num_of_hour=T, nodes=N)

    out_T = embedding_forward(x, params, "T")
    out_S = embedding_forward(x, params, "S")
    jax.block_until_ready((out_T, out_S))
    assert out_T.shape == (B, 1, N, T)
    assert out_S.shape == (B, 1, N, T)

    # Lightweight reference check in plain JAX (same math, no Pallas).
    def ref(x, params, etype):
        x3 = x[:, 0].astype(jnp.float32)
        if etype == "T":
            e = jnp.transpose(x3, (0, 2, 1)) + params["W_T"][None]
            mu = e.mean(-1, keepdims=True)
            v = ((e - mu) ** 2).mean(-1, keepdims=True)
            y = (e - mu) / jnp.sqrt(v + 1e-5)
            y = y * params["Tnorm_gamma"] + params["Tnorm_beta"]
            return jnp.transpose(y, (0, 2, 1))[:, None]
        e = x3 + params["W_S"][None]
        mu = e.mean(-1, keepdims=True)
        v = ((e - mu) ** 2).mean(-1, keepdims=True)
        y = (e - mu) / jnp.sqrt(v + 1e-5)
        y = y * params["Snorm_gamma"] + params["Snorm_beta"]
        return y[:, None]

    assert jnp.allclose(out_T, ref(x, params, "T"), atol=1e-4, rtol=1e-4)
    assert jnp.allclose(out_S, ref(x, params, "S"), atol=1e-4, rtol=1e-4)

    # bf16 I/O path (recommended on v6e/v7x: halves HBM traffic; accumulation stays f32).
    out_T_bf16 = embedding_forward(x.astype(jnp.bfloat16), params, "T")
    jax.block_until_ready(out_T_bf16)
    assert out_T_bf16.dtype == jnp.bfloat16
    assert jnp.allclose(out_T_bf16.astype(jnp.float32), ref(x, params, "T"), atol=5e-2)

    print("KERNEL_OK")
</pallas_src>

<mosaic_0001>
module attributes {stable_mosaic.version = 11 : i64} {
  func.func @_embed_layernorm_kernel(%arg0: i32, %arg1: memref<2x128xf32, #tpu.memory_space<vmem>>, %arg2: memref<3x128xf32, #tpu.memory_space<vmem>>, %arg3: memref<128x128xf32, #tpu.memory_space<vmem>>, %arg4: memref<2x128xf32, #tpu.memory_space<vmem>>) attributes {dimension_semantics = [#tpu.dimension_semantics<parallel>], iteration_bounds = array<i64: 1>, scalar_prefetch = 0 : i64, scratch_operands = 0 : i64, tpu.core_type = #tpu.core_type<tc>, window_params = [{transform_indices = @transform_0, window_bounds = array<i64: 2, 128>}, {pipeline_mode = #tpu.pipeline_mode<synchronous>, transform_indices = @transform_1, window_bounds = array<i64: 3, 128>}, {pipeline_mode = #tpu.pipeline_mode<synchronous>, transform_indices = @transform_2, window_bounds = array<i64: 128, 128>}, {transform_indices = @transform_3, window_bounds = array<i64: 2, 128>}]} {
    %c0 = arith.constant 0 : index
    %c0_0 = arith.constant 0 : index
    %0 = vector.load %arg1[%c0, %c0_0] : memref<2x128xf32, #tpu.memory_space<vmem>>, vector<2x128xf32>
    %c0_1 = arith.constant 0 : index
    %c0_2 = arith.constant 0 : index
    %1 = vector.load %arg2[%c0_1, %c0_2] : memref<3x128xf32, #tpu.memory_space<vmem>>, vector<1x128xf32>
    %2 = vector.broadcast %1 : vector<1x128xf32> to vector<2x128xf32>
    %3 = arith.addf %0, %2 : vector<2x128xf32>
    %c0_3 = arith.constant 0 : index
    %c0_4 = arith.constant 0 : index
    %4 = vector.load %arg3[%c0_3, %c0_4] : memref<128x128xf32, #tpu.memory_space<vmem>>, vector<128x128xf32>
    %cst = arith.constant dense<0.000000e+00> : vector<2x128xf32>
    %5 = tpu.matmul %3, %4, %cst {dimension_numbers = #tpu.dot_dimension_numbers<[1], [0], [0], [1], [0, 0, 1, 1], [], []>, precision = #tpu.contract_precision<fp32>} : vector<2x128xf32>, vector<128x128xf32>, vector<2x128xf32> -> vector<2x128xf32>
    %6 = arith.subf %3, %5 : vector<2x128xf32>
    %7 = arith.mulf %6, %6 : vector<2x128xf32>
    %cst_5 = arith.constant dense<0.000000e+00> : vector<2x128xf32>
    %8 = tpu.matmul %7, %4, %cst_5 {dimension_numbers = #tpu.dot_dimension_numbers<[1], [0], [0], [1], [0, 0, 1, 1], [], []>, precision = #tpu.contract_precision<fp32>} : vector<2x128xf32>, vector<128x128xf32>, vector<2x128xf32> -> vector<2x128xf32>
    %cst_6 = arith.constant 9.99999974E-6 : f32
    %9 = vector.broadcast %cst_6 : f32 to vector<2x128xf32>
    %10 = arith.addf %8, %9 : vector<2x128xf32>
    %11 = math.rsqrt %10 : vector<2x128xf32>
    %c1 = arith.constant 1 : index
    %c0_7 = arith.constant 0 : index
    %12 = vector.load %arg2[%c1, %c0_7] : memref<3x128xf32, #tpu.memory_space<vmem>>, vector<1x128xf32>
    %13 = vector.broadcast %12 : vector<1x128xf32> to vector<2x128xf32>
    %14 = arith.mulf %11, %13 : vector<2x128xf32>
    %15 = arith.mulf %6, %14 : vector<2x128xf32>
    %c2 = arith.constant 2 : index
    %c0_8 = arith.constant 0 : index
    %16 = vector.load %arg2[%c2, %c0_8] : memref<3x128xf32, #tpu.memory_space<vmem>>, vector<1x128xf32>
    %17 = vector.broadcast %16 : vector<1x128xf32> to vector<2x128xf32>
    %18 = arith.addf %15, %17 : vector<2x128xf32>
    %c0_9 = arith.constant 0 : index
    %c0_10 = arith.constant 0 : index
    %19 = vector.load %arg4[%c0_9, %c0_10] : memref<2x128xf32, #tpu.memory_space<vmem>>, vector<2x128xf32>
    tpu.vector_store %arg4[%c0_9, %c0_10], %18 {strides = array<i32>} : memref<2x128xf32, #tpu.memory_space<vmem>>, vector<2x128xf32>,
    return
  }
  func.func @transform_0(%arg0: i32) -> (i32, i32) {
    %c0_i32 = arith.constant 0 : i32
    %c0_i32_0 = arith.constant 0 : i32
    return %arg0, %c0_i32 : i32, i32
  }
  func.func @transform_1(%arg0: i32) -> (i32, i32) {
    %c0_i32 = arith.constant 0 : i32
    %c0_i32_0 = arith.constant 0 : i32
    %c0_i32_1 = arith.constant 0 : i32
    return %c0_i32, %c0_i32_0 : i32, i32
  }
  func.func @transform_2(%arg0: i32) -> (i32, i32) {
    %c0_i32 = arith.constant 0 : i32
    %c0_i32_0 = arith.constant 0 : i32
    %c0_i32_1 = arith.constant 0 : i32
    return %c0_i32, %c0_i32_0 : i32, i32
  }
  func.func @transform_3(%arg0: i32) -> (i32, i32) {
    %c0_i32 = arith.constant 0 : i32
    %c0_i32_0 = arith.constant 0 : i32
    return %arg0, %c0_i32 : i32, i32
  }
}

</mosaic_0001>

<llo_original>
// kernel: squeeze.1
$region0: #{squeeze.1}
  %s0 = inlined_call_operand.vmem [shape: f32[2,1,16,8], index: 0, kind: input, shape index: {}]
  %s1 = inlined_call_operand.vmem [shape: f32[2,128], index: 1, kind: output, shape index: {}]
  $region1: #{squeeze.1} parent=0
    #allocation0 [shape = 'u8[4096]{0}', space=vmem, size = 0x1000, scoped, tag = 'scoped mem for output reshape']
    %s2 = smov 3
    %v3 = vld [vmem:[%s0] ss:$16 sm:%s2]
    %vm4 = vcmask 64512
    %5 = vst.msk [vmem:[#allocation0] sm:$0x3] %vm4, %v3
    %s6 = scalar_lea.vmem %s0, 15
    %s7 = smov 3
    %v8 = vld [vmem:[%s6] ss:$16 sm:%s7]
    %9 = vrot.lane.b32.xlu0 %v8, 120
    %v10 = vpop.permute.xlu0 %9
    %vm11 = vcmask 1048512
    %12 = vst.msk [vmem:[#allocation0] sm:$0x3] %vm11, %v10
    %s13 = scalar_lea.vmem %s0, 14
    %s14 = smov 3
    %v15 = vld [vmem:[%s13] ss:$16 sm:%s14]
    %16 = vrot.lane.b32.xlu0 %v15, 112
    %v17 = vpop.permute.xlu0 %16
    %vm18 = vcmask 982912
    %19 = vst.msk [vmem:[#allocation0] sm:$0x3] %vm18, %v17
    %s20 = scalar_lea.vmem %s0, 13
    %s21 = smov 3
    %v22 = vld [vmem:[%s20] ss:$16 sm:%s21]
    %23 = vrot.lane.b32.xlu0 %v22, 104
    %v24 = vpop.permute.xlu0 %23
    %vm25 = vcmask 917312
    %26 = vst.msk [vmem:[#allocation0] sm:$0x3] %vm25, %v24
    %s27 = scalar_lea.vmem %s0, 12
    %s28 = smov 3
    %v29 = vld [vmem:[%s27] ss:$16 sm:%s28]
    %30 = vrot.lane.b32.xlu0 %v29, 96
    %v31 = vpop.permute.xlu0 %30
    %vm32 = vcmask 851712
    %33 = vst.msk [vmem:[#allocation0] sm:$0x3] %vm32, %v31
    %s34 = scalar_lea.vmem %s0, 11
    %s35 = smov 3
    %v36 = vld [vmem:[%s34] ss:$16 sm:%s35]
    %37 = vrot.lane.b32.xlu0 %v36, 88
    %v38 = vpop.permute.xlu0 %37
    %vm39 = vcmask 786112
    %40 = vst.msk [vmem:[#allocation0] sm:$0x3] %vm39, %v38
    %s41 = scalar_lea.vmem %s0, 10
    %s42 = smov 3
    %v43 = vld [vmem:[%s41] ss:$16 sm:%s42]
    %44 = vrot.lane.b32.xlu0 %v43, 80
    %v45 = vpop.permute.xlu0 %44
    %vm46 = vcmask 720512
    %47 = vst.msk [vmem:[#allocation0] sm:$0x3] %vm46, %v45
    %s48 = scalar_lea.vmem %s0, 9
    %s49 = smov 3
    %v50 = vld [vmem:[%s48] ss:$16 sm:%s49]
    %51 = vrot.lane.b32.xlu0 %v50, 72
    %v52 = vpop.permute.xlu0 %51
    %vm53 = vcmask 654912
    %54 = vst.msk [vmem:[#allocation0] sm:$0x3] %vm53, %v52
    %s55 = scalar_lea.vmem %s0, 8
    %s56 = smov 3
    %v57 = vld [vmem:[%s55] ss:$16 sm:%s56]
    %58 = vrot.lane.b32.xlu0 %v57, 64
    %v59 = vpop.permute.xlu0 %58
    %vm60 = vcmask 589312
    %61 = vst.msk [vmem:[#allocation0] sm:$0x3] %vm60, %v59
    %s62 = scalar_lea.vmem %s0, 7
    %s63 = smov 3
    %v64 = vld [vmem:[%s62] ss:$16 sm:%s63]
    %65 = vrot.lane.b32.xlu0 %v64, 56
    %v66 = vpop.permute.xlu0 %65
    %vm67 = vcmask 523712
    %68 = vst.msk [vmem:[#allocation0] sm:$0x3] %vm67, %v66
    %s69 = scalar_lea.vmem %s0, 6
    %s70 = smov 3
    %v71 = vld [vmem:[%s69] ss:$16 sm:%s70]
    %72 = vrot.lane.b32.xlu0 %v71, 48
    %v73 = vpop.permute.xlu0 %72
    %vm74 = vcmask 458112
    %75 = vst.msk [vmem:[#allocation0] sm:$0x3] %vm74, %v73
    %s76 = scalar_lea.vmem %s0, 5
    %s77 = smov 3
    %v78 = vld [vmem:[%s76] ss:$16 sm:%s77]
    %79 = vrot.lane.b32.xlu0 %v78, 40
    %v80 = vpop.permute.xlu0 %79
    %vm81 = vcmask 392512
    %82 = vst.msk [vmem:[#allocation0] sm:$0x3] %vm81, %v80
    %s83 = scalar_lea.vmem %s0, 4
    %s84 = smov 3
    %v85 = vld [vmem:[%s83] ss:$16 sm:%s84]
    %86 = vrot.lane.b32.xlu0 %v85, 32
    %v87 = vpop.permute.xlu0 %86
    %vm88 = vcmask 326912
    %89 = vst.msk [vmem:[#allocation0] sm:$0x3] %vm88, %v87
    %s90 = scalar_lea.vmem %s0, 3
    %s91 = smov 3
    %v92 = vld [vmem:[%s90] ss:$16 sm:%s91]
    %93 = vrot.lane.b32.xlu0 %v92, 24
    %v94 = vpop.permute.xlu0 %93
    %vm95 = vcmask 261312
    %96 = vst.msk [vmem:[#allocation0] sm:$0x3] %vm95, %v94
    %s97 = scalar_lea.vmem %s0, 2
    %s98 = smov 3
    %v99 = vld [vmem:[%s97] ss:$16 sm:%s98]
    %100 = vrot.lane.b32.xlu0 %v99, 16
    %v101 = vpop.permute.xlu0 %100
    %vm102 = vcmask 195712
    %103 = vst.msk [vmem:[#allocation0] sm:$0x3] %vm102, %v101
    %s104 = scalar_lea.vmem %s0, 1
    %s105 = smov 3
    %v106 = vld [vmem:[%s104] ss:$16 sm:%s105]
    %107 = vrot.lane.b32.xlu0 %v106, 8
    %v108 = vpop.permute.xlu0 %107
    %vm109 = vcmask 130112
    %110 = vst.msk [vmem:[#allocation0] sm:$0x3] %vm109, %v108
    %s112 = ssub.s32 4, 1
    %v113 = vld [vmem:[#allocation0] sm:%s112]
    %s115 = ssub.s32 4, 1
    %116 = vst [vmem:[%s1] sm:%s115] %v113

// kernel: embedding_forward.1
$region0: #{embedding_forward.1}
  #allocation0 [shape = 'u32[]', space=smem, size = 0x4, offset = 0x4, fixed_abs, tag = 'smem constant byte address 0x4 - core index']
  #allocation1 [shape = 'u32[72,128]{1,0:T(1,128)}', space=vmem, size = 0x9000, scoped, tag = 'internal scratch']
  %s0 = inlined_call_operand.vmem [shape: f32[2,128], index: 0, kind: input, shape index: {}]
  %s1 = inlined_call_operand.vmem [shape: f32[3,128], index: 1, kind: input, shape index: {}]
  %s2 = inlined_call_operand.hbm [shape: f32[128,128], index: 2, kind: input, shape index: {}]
  %s3 = inlined_call_operand.vmem [shape: f32[2,128], index: 3, kind: output, shape index: {}]
  %s4 = sld [smem:[#allocation0]]
  $region26: #{embedding_forward.1} parent=0
    _
  %s6 = ssub.s32 1, %s4
  %s7 = scalar_select 0, %s6, %s4
  $region1: #{embedding_forward.1} parent=0
    #allocation2 [shape = 'u8[65536]{0}', space=vmem, size = 0x10000, scoped, tag = 'input window, operand 2, single buffered']
    #allocation3 [shape = 's32[1]{0}', space=sflag, size = 0x4, scoped, tag = 'scoped memory for embedding_forward.1']
    %8 = vsyncpa [#allocation3], 0
    // Predicated region
    $region2: #{embedding_forward.1} parent=1 // pred_check
      _
    $region3: #{embedding_forward.1} parent=1 // pred_check_branch
      %10 = sbr.rel (0) target = $region5
    $region4: #{embedding_forward.1} parent=1 // pred_region
      _
    $region5: #{embedding_forward.1} parent=1 // pred_fallthru
      _
    // Predicated region
    $region6: #{embedding_forward.1} parent=1 // pred_check
      _
    $region7: #{embedding_forward.1} parent=1 // pred_check_branch
      %12 = sbr.rel (0) target = $region9
    $region8: #{embedding_forward.1} parent=1 // pred_region
      _
    $region9: #{embedding_forward.1} parent=1 // pred_fallthru
      _
    // Predicated region
    $region10: #{embedding_forward.1} parent=1 // pred_check
      _
    $region11: #{embedding_forward.1} parent=1 // pred_check_branch
      %14 = sbr.rel (0) target = $region13
    $region12: #{embedding_forward.1} parent=1 // pred_region
      %16 = vsyncadd [#allocation3], 0
      %s17 = sshll.u32 %s2, 4
      %s18 = int_to_ptr.hbm [resolvable:$true] %s17
      %s19 = sshll.u32 [#allocation2], 4
      %s20 = int_to_ptr.vmem [resolvable:$true] %s19
      %25 = dma.hbm_to_vmem [thread:$0]  %s18, 2048, %s20, [#allocation3], 128, 128, 8
    $region13: #{embedding_forward.1} parent=1 // pred_fallthru
      _
    // Predicated region
    $region14: #{embedding_forward.1} parent=1 // pred_check
      _
    $region15: #{embedding_forward.1} parent=1 // pred_check_branch
      %27 = sbr.rel (0) target = $region17
    $region16: #{embedding_forward.1} parent=1 // pred_region
      %29 = dma.done [#allocation3], 2048
    $region17: #{embedding_forward.1} parent=1 // pred_fallthru
      _
    %v30 = vld [vmem:[%s0] sm:$0x3]
    %v31 = vld [vmem:[%s1] sm:$0x1]
    %v32 = vperm.slane %v31, 0
    %v33 = vadd.f32 %v30, %v32
    %v34 = vld [vmem:[#allocation2] sm:$0xff]
    %v35 = vld [vmem:[#allocation2 + $0x8] sm:$0xff]
    %v36 = vld [vmem:[#allocation2 + $0x10] sm:$0xff]
    %v37 = vld [vmem:[#allocation2 + $0x18] sm:$0xff]
    %v38 = vld [vmem:[#allocation2 + $0x20] sm:$0xff]
    %v39 = vld [vmem:[#allocation2 + $0x28] sm:$0xff]
    %v40 = vld [vmem:[#allocation2 + $0x30] sm:$0xff]
    %v41 = vld [vmem:[#allocation2 + $0x38] sm:$0xff]
    %v42 = vld [vmem:[#allocation2 + $0x40] sm:$0xff]
    %v43 = vld [vmem:[#allocation2 + $0x48] sm:$0xff]
    %v44 = vld [vmem:[#allocation2 + $0x50] sm:$0xff]
    %v45 = vld [vmem:[#allocation2 + $0x58] sm:$0xff]
    %v46 = vld [vmem:[#allocation2 + $0x60] sm:$0xff]
    %v47 = vld [vmem:[#allocation2 + $0x68] sm:$0xff]
    %v48 = vld [vmem:[#allocation2 + $0x70] sm:$0xff]
    %v49 = vld [vmem:[#allocation2 + $0x78] sm:$0xff]
    %v50 = vand.u32 %v49, 4294901760
    %51 = vmatpush.msra.mxu0 %v50
    %v52 = vand.u32 %v48, 4294901760
    %53 = vmatpush.msra.mxu0 %v52
    %v54 = vand.u32 %v47, 4294901760
    %55 = vmatpush.msra.mxu0 %v54
    %v56 = vand.u32 %v46, 4294901760
    %57 = vmatpush.msra.mxu0 %v56
    %v58 = vand.u32 %v45, 4294901760
    %59 = vmatpush.msra.mxu0 %v58
    %v60 = vand.u32 %v44, 4294901760
    %61 = vmatpush.msra.mxu0 %v60
    %v62 = vand.u32 %v43, 4294901760
    %63 = vmatpush.msra.mxu0 %v62
    %v64 = vand.u32 %v42, 4294901760
    %65 = vmatpush.msra.mxu0 %v64
    %v66 = vand.u32 %v41, 4294901760
    %67 = vmatpush.msra.mxu0 %v66
    %v68 = vand.u32 %v40, 4294901760
    %69 = vmatpush.msra.mxu0 %v68
    %v70 = vand.u32 %v39, 4294901760
    %71 = vmatpush.msra.mxu0 %v70
    %v72 = vand.u32 %v38, 4294901760
    %73 = vmatpush.msra.mxu0 %v72
    %v74 = vand.u32 %v37, 4294901760
    %75 = vmatpush.msra.mxu0 %v74
    %v76 = vand.u32 %v36, 4294901760
    %77 = vmatpush.msra.mxu0 %v76
    %v78 = vand.u32 %v35, 4294901760
    %79 = vmatpush.msra.mxu0 %v78
    %v80 = vand.u32 %v34, 4294901760
    %81 = vmatpush.msra.mxu0 %v80
    %v82 = vand.u32 %v33, 4294901760
    %v83 = vsub.f32 %v33, %v82
    %v84 = vand.u32 %v83, 4294901760
    %v85 = vsub.f32 %v83, %v84
    %v86 = vand.u32 %v85, 4294901760
    %87 = vmatmul.f32.gmra.mxu0 %v86
    %v88 = vpop.f32.mrf.mxu0
    %v89 = vadd.f32 0.0, %v88
    %90 = vdwg.mxu0
    %v91 = vand.u32 %v49, 4294901760
    %v92 = vsub.f32 %v49, %v91
    %v93 = vand.u32 %v92, 4294901760
    %v94 = vsub.f32 %v92, %v93
    %v95 = vand.u32 %v94, 4294901760
    %96 = vmatpush.msra.mxu0 %v95
    %v97 = vand.u32 %v48, 4294901760
    %v98 = vsub.f32 %v48, %v97
    %v99 = vand.u32 %v98, 4294901760
    %v100 = vsub.f32 %v98, %v99
    %v101 = vand.u32 %v100, 4294901760
    %102 = vmatpush.msra.mxu0 %v101
    %v103 = vand.u32 %v47, 4294901760
    %v104 = vsub.f32 %v47, %v103
    %v105 = vand.u32 %v104, 4294901760
    %v106 = vsub.f32 %v104, %v105
    %v107 = vand.u32 %v106, 4294901760
    %108 = vmatpush.msra.mxu0 %v107
    %v109 = vand.u32 %v46, 4294901760
    %v110 = vsub.f32 %v46, %v109
    %v111 = vand.u32 %v110, 4294901760
    %v112 = vsub.f32 %v110, %v111
    %v113 = vand.u32 %v112, 4294901760
    %114 = vmatpush.msra.mxu0 %v113
    %v115 = vand.u32 %v45, 4294901760
    %v116 = vsub.f32 %v45, %v115
    %v117 = vand.u32 %v116, 4294901760
    %v118 = vsub.f32 %v116, %v117
    %v119 = vand.u32 %v118, 4294901760
    %120 = vmatpush.msra.mxu0 %v119
    %v121 = vand.u32 %v44, 4294901760
    %v122 = vsub.f32 %v44, %v121
    %v123 = vand.u32 %v122, 4294901760
    %v124 = vsub.f32 %v122, %v123
    %v125 = vand.u32 %v124, 4294901760
    %126 = vmatpush.msra.mxu0 %v125
    %v127 = vand.u32 %v43, 4294901760
    %v128 = vsub.f32 %v43, %v127
    %v129 = vand.u32 %v128, 4294901760
    %v130 = vsub.f32 %v128, %v129
    %v131 = vand.u32 %v130, 4294901760
    %132 = vmatpush.msra.mxu0 %v131
    %v133 = vand.u32 %v42, 4294901760
    %v134 = vsub.f32 %v42, %v133
    %v135 = vand.u32 %v134, 4294901760
    %v136 = vsub.f32 %v134, %v135
    %v137 = vand.u32 %v136, 4294901760
    %138 = vmatpush.msra.mxu0 %v137
    %v139 = vand.u32 %v41, 4294901760
    %v140 = vsub.f32 %v41, %v139
    %v141 = vand.u32 %v140, 4294901760
    %v142 = vsub.f32 %v140, %v141
    %v143 = vand.u32 %v142, 4294901760
    %144 = vmatpush.msra.mxu0 %v143
    %v145 = vand.u32 %v40, 4294901760
    %v146 = vsub.f32 %v40, %v145
    %v147 = vand.u32 %v146, 4294901760
    %v148 = vsub.f32 %v146, %v147
    %v149 = vand.u32 %v148, 4294901760
    %150 = vmatpush.msra.mxu0 %v149
    %v151 = vand.u32 %v39, 4294901760
    %v152 = vsub.f32 %v39, %v151
    %v153 = vand.u32 %v152, 4294901760
    %v154 = vsub.f32 %v152, %v153
    %v155 = vand.u32 %v154, 4294901760
    %156 = vmatpush.msra.mxu0 %v155
    %v157 = vand.u32 %v38, 4294901760
    %v158 = vsub.f32 %v38, %v157
    %v159 = vand.u32 %v158, 4294901760
    %v160 = vsub.f32 %v158, %v159
    %v161 = vand.u32 %v160, 4294901760
    %162 = vmatpush.msra.mxu0 %v161
    %v163 = vand.u32 %v37, 4294901760
    %v164 = vsub.f32 %v37, %v163
    %v165 = vand.u32 %v164, 4294901760
    %v166 = vsub.f32 %v164, %v165
    %v167 = vand.u32 %v166, 4294901760
    %168 = vmatpush.msra.mxu0 %v167
    %v169 = vand.u32 %v36, 4294901760
    %v170 = vsub.f32 %v36, %v169
    %v171 = vand.u32 %v170, 4294901760
    %v172 = vsub.f32 %v170, %v171
    %v173 = vand.u32 %v172, 4294901760
    %174 = vmatpush.msra.mxu0 %v173
    %v175 = vand.u32 %v35, 4294901760
    %v176 = vsub.f32 %v35, %v175
    %v177 = vand.u32 %v176, 4294901760
    %v178 = vsub.f32 %v176, %v177
    %v179 = vand.u32 %v178, 4294901760
    %180 = vmatpush.msra.mxu0 %v179
    %v181 = vand.u32 %v34, 4294901760
    %v182 = vsub.f32 %v34, %v181
    %v183 = vand.u32 %v182, 4294901760
    %v184 = vsub.f32 %v182, %v183
    %v185 = vand.u32 %v184, 4294901760
    %186 = vmatpush.msra.mxu0 %v185
    %v187 = vand.u32 %v33, 4294901760
    %188 = vmatmul.f32.gmra.mxu0 %v187
    %v189 = vpop.f32.mrf.mxu0
    %v190 = vadd.f32 %v89, %v189
    %191 = vdwg.mxu0
    %v192 = vand.u32 %v49, 4294901760
    %v193 = vsub.f32 %v49, %v192
    %194 = vmatpush.msra.mxu0 %v193
    %v195 = vand.u32 %v48, 4294901760
    %v196 = vsub.f32 %v48, %v195
    %197 = vmatpush.msra.mxu0 %v196
    %v198 = vand.u32 %v47, 4294901760
    %v199 = vsub.f32 %v47, %v198
    %200 = vmatpush.msra.mxu0 %v199
    %v201 = vand.u32 %v46, 4294901760
    %v202 = vsub.f32 %v46, %v201
    %203 = vmatpush.msra.mxu0 %v202
    %v204 = vand.u32 %v45, 4294901760
    %v205 = vsub.f32 %v45, %v204
    %206 = vmatpush.msra.mxu0 %v205
    %v207 = vand.u32 %v44, 4294901760
    %v208 = vsub.f32 %v44, %v207
    %209 = vmatpush.msra.mxu0 %v208
    %v210 = vand.u32 %v43, 4294901760
    %v211 = vsub.f32 %v43, %v210
    %212 = vmatpush.msra.mxu0 %v211
    %v213 = vand.u32 %v42, 4294901760
    %v214 = vsub.f32 %v42, %v213
    %215 = vmatpush.msra.mxu0 %v214
    %v216 = vand.u32 %v41, 4294901760
    %v217 = vsub.f32 %v41, %v216
    %218 = vmatpush.msra.mxu0 %v217
    %v219 = vand.u32 %v40, 4294901760
    %v220 = vsub.f32 %v40, %v219
    %221 = vmatpush.msra.mxu0 %v220
    %v222 = vand.u32 %v39, 4294901760
    %v223 = vsub.f32 %v39, %v222
    %224 = vmatpush.msra.mxu0 %v223
    %v225 = vand.u32 %v38, 4294901760
    %v226 = vsub.f32 %v38, %v225
    %227 = vmatpush.msra.mxu0 %v226
    %v228 = vand.u32 %v37, 4294901760
    %v229 = vsub.f32 %v37, %v228
    %230 = vmatpush.msra.mxu0 %v229
    %v231 = vand.u32 %v36, 4294901760
    %v232 = vsub.f32 %v36, %v231
    %233 = vmatpush.msra.mxu0 %v232
    %v234 = vand.u32 %v35, 4294901760
    %v235 = vsub.f32 %v35, %v234
    %236 = vmatpush.msra.mxu0 %v235
    %v237 = vand.u32 %v34, 4294901760
    %v238 = vsub.f32 %v34, %v237
    %239 = vmatpush.msra.mxu0 %v238
    %v240 = vand.u32 %v33, 4294901760
    %v241 = vsub.f32 %v33, %v240
    %242 = vmatmul.f32.gmra.mxu0 %v241
    %v243 = vpop.f32.mrf.mxu0
    %v244 = vadd.f32 %v190, %v243
    %245 = vdwg.mxu0
    %v246 = vand.u32 %v49, 4294901760
    %247 = vmatpush.msra.mxu0 %v246
    %v248 = vand.u32 %v48, 4294901760
    %249 = vmatpush.msra.mxu0 %v248
    %v250 = vand.u32 %v47, 4294901760
    %251 = vmatpush.msra.mxu0 %v250
    %v252 = vand.u32 %v46, 4294901760
    %253 = vmatpush.msra.mxu0 %v252
    %v254 = vand.u32 %v45, 4294901760
    %255 = vmatpush.msra.mxu0 %v254
    %v256 = vand.u32 %v44, 4294901760
    %257 = vmatpush.msra.mxu0 %v256
    %v258 = vand.u32 %v43, 4294901760
    %259 = vmatpush.msra.mxu0 %v258
    %v260 = vand.u32 %v42, 4294901760
    %261 = vmatpush.msra.mxu0 %v260
    %v262 = vand.u32 %v41, 4294901760
    %263 = vmatpush.msra.mxu0 %v262
    %v264 = vand.u32 %v40, 4294901760
    %265 = vmatpush.msra.mxu0 %v264
    %v266 = vand.u32 %v39, 4294901760
    %267 = vmatpush.msra.mxu0 %v266
    %v268 = vand.u32 %v38, 4294901760
    %269 = vmatpush.msra.mxu0 %v268
    %v270 = vand.u32 %v37, 4294901760
    %271 = vmatpush.msra.mxu0 %v270
    %v272 = vand.u32 %v36, 4294901760
    %273 = vmatpush.msra.mxu0 %v272
    %v274 = vand.u32 %v35, 4294901760
    %275 = vmatpush.msra.mxu0 %v274
    %v276 = vand.u32 %v34, 4294901760
    %277 = vmatpush.msra.mxu0 %v276
    %v278 = vand.u32 %v33, 4294901760
    %v279 = vsub.f32 %v33, %v278
    %v280 = vand.u32 %v279, 4294901760
    %281 = vmatmul.f32.gmra.mxu0 %v280
    %v282 = vpop.f32.mrf.mxu0
    %v283 = vadd.f32 %v244, %v282
    %284 = vdwg.mxu0
    %v285 = vand.u32 %v49, 4294901760
    %v286 = vsub.f32 %v49, %v285
    %v287 = vand.u32 %v286, 4294901760
    %288 = vmatpush.msra.mxu0 %v287
    %v289 = vand.u32 %v48, 4294901760
    %v290 = vsub.f32 %v48, %v289
    %v291 = vand.u32 %v290, 4294901760
    %292 = vmatpush.msra.mxu0 %v291
    %v293 = vand.u32 %v47, 4294901760
    %v294 = vsub.f32 %v47, %v293
    %v295 = vand.u32 %v294, 4294901760
    %296 = vmatpush.msra.mxu0 %v295
    %v297 = vand.u32 %v46, 4294901760
    %v298 = vsub.f32 %v46, %v297
    %v299 = vand.u32 %v298, 4294901760
    %300 = vmatpush.msra.mxu0 %v299
    %v301 = vand.u32 %v45, 4294901760
    %v302 = vsub.f32 %v45, %v301
    %v303 = vand.u32 %v302, 4294901760
    %304 = vmatpush.msra.mxu0 %v303
    %v305 = vand.u32 %v44, 4294901760
    %v306 = vsub.f32 %v44, %v305
    %v307 = vand.u32 %v306, 4294901760
    %308 = vmatpush.msra.mxu0 %v307
    %v309 = vand.u32 %v43, 4294901760
    %v310 = vsub.f32 %v43, %v309
    %v311 = vand.u32 %v310, 4294901760
    %312 = vmatpush.msra.mxu0 %v311
    %v313 = vand.u32 %v42, 4294901760
    %v314 = vsub.f32 %v42, %v313
    %v315 = vand.u32 %v314, 4294901760
    %316 = vmatpush.msra.mxu0 %v315
    %v317 = vand.u32 %v41, 4294901760
    %v318 = vsub.f32 %v41, %v317
    %v319 = vand.u32 %v318, 4294901760
    %320 = vmatpush.msra.mxu0 %v319
    %v321 = vand.u32 %v40, 4294901760
    %v322 = vsub.f32 %v40, %v321
    %v323 = vand.u32 %v322, 4294901760
    %324 = vmatpush.msra.mxu0 %v323
    %v325 = vand.u32 %v39, 4294901760
    %v326 = vsub.f32 %v39, %v325
    %v327 = vand.u32 %v326, 4294901760
    %328 = vmatpush.msra.mxu0 %v327
    %v329 = vand.u32 %v38, 4294901760
    %v330 = vsub.f32 %v38, %v329
    %v331 = vand.u32 %v330, 4294901760
    %332 = vmatpush.msra.mxu0 %v331
    %v333 = vand.u32 %v37, 4294901760
    %v334 = vsub.f32 %v37, %v333
    %v335 = vand.u32 %v334, 4294901760
    %336 = vmatpush.msra.mxu0 %v335
    %v337 = vand.u32 %v36, 4294901760
    %v338 = vsub.f32 %v36, %v337
    %v339 = vand.u32 %v338, 4294901760
    %340 = vmatpush.msra.mxu0 %v339
    %v341 = vand.u32 %v35, 4294901760
    %v342 = vsub.f32 %v35, %v341
    %v343 = vand.u32 %v342, 4294901760
    %344 = vmatpush.msra.mxu0 %v343
    %v345 = vand.u32 %v34, 4294901760
    %v346 = vsub.f32 %v34, %v345
    %v347 = vand.u32 %v346, 4294901760
    %348 = vmatpush.msra.mxu0 %v347
    %v349 = vand.u32 %v33, 4294901760
    %350 = vmatmul.f32.gmra.mxu0 %v349
    %v351 = vpop.f32.mrf.mxu0
    %v352 = vadd.f32 %v283, %v351
    %353 = vdwg.mxu0
    %v354 = vand.u32 %v49, 4294901760
    %355 = vmatpush.msra.mxu0 %v354
    %v356 = vand.u32 %v48, 4294901760
    %357 = vmatpush.msra.mxu0 %v356
    %v358 = vand.u32 %v47, 4294901760
    %359 = vmatpush.msra.mxu0 %v358
    %v360 = vand.u32 %v46, 4294901760
    %361 = vmatpush.msra.mxu0 %v360
    %v362 = vand.u32 %v45, 4294901760
    %363 = vmatpush.msra.mxu0 %v362
    %v364 = vand.u32 %v44, 4294901760
    %365 = vmatpush.msra.mxu0 %v364
    %v366 = vand.u32 %v43, 4294901760
    %367 = vmatpush.msra.mxu0 %v366
    %v368 = vand.u32 %v42, 4294901760
    %369 = vmatpush.msra.mxu0 %v368
    %v370 = vand.u32 %v41, 4294901760
    %371 = vmatpush.msra.mxu0 %v370
    %v372 = vand.u32 %v40, 4294901760
    %373 = vmatpush.msra.mxu0 %v372
    %v374 = vand.u32 %v39, 4294901760
    %375 = vmatpush.msra.mxu0 %v374
    %v376 = vand.u32 %v38, 4294901760
    %377 = vmatpush.msra.mxu0 %v376
    %v378 = vand.u32 %v37, 4294901760
    %379 = vmatpush.msra.mxu0 %v378
    %v380 = vand.u32 %v36, 4294901760
    %381 = vmatpush.msra.mxu0 %v380
    %v382 = vand.u32 %v35, 4294901760
    %383 = vmatpush.msra.mxu0 %v382
    %v384 = vand.u32 %v34, 4294901760
    %385 = vmatpush.msra.mxu0 %v384
    %v386 = vand.u32 %v33, 4294901760
    %387 = vmatmul.f32.gmra.mxu0 %v386
    %v388 = vpop.f32.mrf.mxu0
    %v389 = vadd.f32 %v352, %v388
    %390 = vdwg.mxu0
    %v391 = vsub.f32 %v33, %v389
    %v392 = vmul.f32 %v391, %v391
    %v393 = vand.u32 %v49, 4294901760
    %394 = vmatpush.msra.mxu0 %v393
    %v395 = vand.u32 %v48, 4294901760
    %396 = vmatpush.msra.mxu0 %v395
    %v397 = vand.u32 %v47, 4294901760
    %398 = vmatpush.msra.mxu0 %v397
    %v399 = vand.u32 %v46, 4294901760
    %400 = vmatpush.msra.mxu0 %v399
    %v401 = vand.u32 %v45, 4294901760
    %402 = vmatpush.msra.mxu0 %v401
    %v403 = vand.u32 %v44, 4294901760
    %404 = vmatpush.msra.mxu0 %v403
    %v405 = vand.u32 %v43, 4294901760
    %406 = vmatpush.msra.mxu0 %v405
    %v407 = vand.u32 %v42, 4294901760
    %408 = vmatpush.msra.mxu0 %v407
    %v409 = vand.u32 %v41, 4294901760
    %410 = vmatpush.msra.mxu0 %v409
    %v411 = vand.u32 %v40, 4294901760
    %412 = vmatpush.msra.mxu0 %v411
    %v413 = vand.u32 %v39, 4294901760
    %414 = vmatpush.msra.mxu0 %v413
    %v415 = vand.u32 %v38, 4294901760
    %416 = vmatpush.msra.mxu0 %v415
    %v417 = vand.u32 %v37, 4294901760
    %418 = vmatpush.msra.mxu0 %v417
    %v419 = vand.u32 %v36, 4294901760
    %420 = vmatpush.msra.mxu0 %v419
    %v421 = vand.u32 %v35, 4294901760
    %422 = vmatpush.msra.mxu0 %v421
    %v423 = vand.u32 %v34, 4294901760
    %424 = vmatpush.msra.mxu0 %v423
    %v425 = vand.u32 %v392, 4294901760
    %v426 = vsub.f32 %v392, %v425
    %v427 = vand.u32 %v426, 4294901760
    %v428 = vsub.f32 %v426, %v427
    %v429 = vand.u32 %v428, 4294901760
    %430 = vmatmul.f32.gmra.mxu0 %v429
    %v431 = vpop.f32.mrf.mxu0
    %v432 = vadd.f32 1e-05, %v431
    %433 = vdwg.mxu0
    %v434 = vand.u32 %v49, 4294901760
    %v435 = vsub.f32 %v49, %v434
    %v436 = vand.u32 %v435, 4294901760
    %v437 = vsub.f32 %v435, %v436
    %v438 = vand.u32 %v437, 4294901760
    %439 = vmatpush.msra.mxu0 %v438
    %v440 = vand.u32 %v48, 4294901760
    %v441 = vsub.f32 %v48, %v440
    %v442 = vand.u32 %v441, 4294901760
    %v443 = vsub.f32 %v441, %v442
    %v444 = vand.u32 %v443, 4294901760
    %445 = vmatpush.msra.mxu0 %v444
    %v446 = vand.u32 %v47, 4294901760
    %v447 = vsub.f32 %v47, %v446
    %v448 = vand.u32 %v447, 4294901760
    %v449 = vsub.f32 %v447, %v448
    %v450 = vand.u32 %v449, 4294901760
    %451 = vmatpush.msra.mxu0 %v450
    %v452 = vand.u32 %v46, 4294901760
    %v453 = vsub.f32 %v46, %v452
    %v454 = vand.u32 %v453, 4294901760
    %v455 = vsub.f32 %v453, %v454
    %v456 = vand.u32 %v455, 4294901760
    %457 = vmatpush.msra.mxu0 %v456
    %v458 = vand.u32 %v45, 4294901760
    %v459 = vsub.f32 %v45, %v458
    %v460 = vand.u32 %v459, 4294901760
    %v461 = vsub.f32 %v459, %v460
    %v462 = vand.u32 %v461, 4294901760
    %463 = vmatpush.msra.mxu0 %v462
    %v464 = vand.u32 %v44, 4294901760
    %v465 = vsub.f32 %v44, %v464
    %v466 = vand.u32 %v465, 4294901760
    %v467 = vsub.f32 %v465, %v466
    %v468 = vand.u32 %v467, 4294901760
    %469 = vmatpush.msra.mxu0 %v468
    %v470 = vand.u32 %v43, 4294901760
    %v471 = vsub.f32 %v43, %v470
    %v472 = vand.u32 %v471, 4294901760
    %v473 = vsub.f32 %v471, %v472
    %v474 = vand.u32 %v473, 4294901760
    %475 = vmatpush.msra.mxu0 %v474
    %v476 = vand.u32 %v42, 4294901760
    %v477 = vsub.f32 %v42, %v476
    %v478 = vand.u32 %v477, 4294901760
    %v479 = vsub.f32 %v477, %v478
    %v480 = vand.u32 %v479, 4294901760
    %481 = vmatpush.msra.mxu0 %v480
    %v482 = vand.u32 %v41, 4294901760
    %v483 = vsub.f32 %v41, %v482
    %v484 = vand.u32 %v483, 4294901760
    %v485 = vsub.f32 %v483, %v484
    %v486 = vand.u32 %v485, 4294901760
    %487 = vmatpush.msra.mxu0 %v486
    %v488 = vand.u32 %v40, 4294901760
    %v489 = vsub.f32 %v40, %v488
    %v490 = vand.u32 %v489, 4294901760
    %v491 = vsub.f32 %v489, %v490
    %v492 = vand.u32 %v491, 4294901760
    %493 = vmatpush.msra.mxu0 %v492
    %v494 = vand.u32 %v39, 4294901760
    %v495 = vsub.f32 %v39, %v494
    %v496 = vand.u32 %v495, 4294901760
    %v497 = vsub.f32 %v495, %v496
    %v498 = vand.u32 %v497, 4294901760
    %499 = vmatpush.msra.mxu0 %v498
    %v500 = vand.u32 %v38, 4294901760
    %v501 = vsub.f32 %v38, %v500
    %v502 = vand.u32 %v501, 4294901760
    %v503 = vsub.f32 %v501, %v502
    %v504 = vand.u32 %v503, 4294901760
    %505 = vmatpush.msra.mxu0 %v504
    %v506 = vand.u32 %v37, 4294901760
    %v507 = vsub.f32 %v37, %v506
    %v508 = vand.u32 %v507, 4294901760
    %v509 = vsub.f32 %v507, %v508
    %v510 = vand.u32 %v509, 4294901760
    %511 = vmatpush.msra.mxu0 %v510
    %v512 = vand.u32 %v36, 4294901760
    %v513 = vsub.f32 %v36, %v512
    %v514 = vand.u32 %v513, 4294901760
    %v515 = vsub.f32 %v513, %v514
    %v516 = vand.u32 %v515, 4294901760
    %517 = vmatpush.msra.mxu0 %v516
    %v518 = vand.u32 %v35, 4294901760
    %v519 = vsub.f32 %v35, %v518
    %v520 = vand.u32 %v519, 4294901760
    %v521 = vsub.f32 %v519, %v520
    %v522 = vand.u32 %v521, 4294901760
    %523 = vmatpush.msra.mxu0 %v522
    %v524 = vand.u32 %v34, 4294901760
    %v525 = vsub.f32 %v34, %v524
    %v526 = vand.u32 %v525, 4294901760
    %v527 = vsub.f32 %v525, %v526
    %v528 = vand.u32 %v527, 4294901760
    %529 = vmatpush.msra.mxu0 %v528
    %v530 = vand.u32 %v392, 4294901760
    %531 = vmatmul.f32.gmra.mxu0 %v530
    %v532 = vpop.f32.mrf.mxu0
    %v533 = vadd.f32 %v432, %v532
    %534 = vdwg.mxu0
    %v535 = vand.u32 %v49, 4294901760
    %v536 = vsub.f32 %v49, %v535
    %537 = vmatpush.msra.mxu0 %v536
    %v538 = vand.u32 %v48, 4294901760
    %v539 = vsub.f32 %v48, %v538
    %540 = vmatpush.msra.mxu0 %v539
    %v541 = vand.u32 %v47, 4294901760
    %v542 = vsub.f32 %v47, %v541
    %543 = vmatpush.msra.mxu0 %v542
    %v544 = vand.u32 %v46, 4294901760
    %v545 = vsub.f32 %v46, %v544
    %546 = vmatpush.msra.mxu0 %v545
    %v547 = vand.u32 %v45, 4294901760
    %v548 = vsub.f32 %v45, %v547
    %549 = vmatpush.msra.mxu0 %v548
    %v550 = vand.u32 %v44, 4294901760
    %v551 = vsub.f32 %v44, %v550
    %552 = vmatpush.msra.mxu0 %v551
    %v553 = vand.u32 %v43, 4294901760
    %v554 = vsub.f32 %v43, %v553
    %555 = vmatpush.msra.mxu0 %v554
    %v556 = vand.u32 %v42, 4294901760
    %v557 = vsub.f32 %v42, %v556
    %558 = vmatpush.msra.mxu0 %v557
    %v559 = vand.u32 %v41, 4294901760
    %v560 = vsub.f32 %v41, %v559
    %561 = vmatpush.msra.mxu0 %v560
    %v562 = vand.u32 %v40, 4294901760
    %v563 = vsub.f32 %v40, %v562
    %564 = vmatpush.msra.mxu0 %v563
    %v565 = vand.u32 %v39, 4294901760
    %v566 = vsub.f32 %v39, %v565
    %567 = vmatpush.msra.mxu0 %v566
    %v568 = vand.u32 %v38, 4294901760
    %v569 = vsub.f32 %v38, %v568
    %570 = vmatpush.msra.mxu0 %v569
    %v571 = vand.u32 %v37, 4294901760
    %v572 = vsub.f32 %v37, %v571
    %573 = vmatpush.msra.mxu0 %v572
    %v574 = vand.u32 %v36, 4294901760
    %v575 = vsub.f32 %v36, %v574
    %576 = vmatpush.msra.mxu0 %v575
    %v577 = vand.u32 %v35, 4294901760
    %v578 = vsub.f32 %v35, %v577
    %579 = vmatpush.msra.mxu0 %v578
    %v580 = vand.u32 %v34, 4294901760
    %v581 = vsub.f32 %v34, %v580
    %582 = vmatpush.msra.mxu0 %v581
    %v583 = vand.u32 %v392, 4294901760
    %v584 = vsub.f32 %v392, %v583
    %585 = vmatmul.f32.gmra.mxu0 %v584
    %v586 = vpop.f32.mrf.mxu0
    %v587 = vadd.f32 %v533, %v586
    %588 = vdwg.mxu0
    %v589 = vand.u32 %v49, 4294901760
    %590 = vmatpush.msra.mxu0 %v589
    %v591 = vand.u32 %v48, 4294901760
    %592 = vmatpush.msra.mxu0 %v591
    %v593 = vand.u32 %v47, 4294901760
    %594 = vmatpush.msra.mxu0 %v593
    %v595 = vand.u32 %v46, 4294901760
    %596 = vmatpush.msra.mxu0 %v595
    %v597 = vand.u32 %v45, 4294901760
    %598 = vmatpush.msra.mxu0 %v597
    %v599 = vand.u32 %v44, 4294901760
    %600 = vmatpush.msra.mxu0 %v599
    %v601 = vand.u32 %v43, 4294901760
    %602 = vmatpush.msra.mxu0 %v601
    %v603 = vand.u32 %v42, 4294901760
    %604 = vmatpush.msra.mxu0 %v603
    %v605 = vand.u32 %v41, 4294901760
    %606 = vmatpush.msra.mxu0 %v605
    %v607 = vand.u32 %v40, 4294901760
    %608 = vmatpush.msra.mxu0 %v607
    %v609 = vand.u32 %v39, 4294901760
    %610 = vmatpush.msra.mxu0 %v609
    %v611 = vand.u32 %v38, 4294901760
    %612 = vmatpush.msra.mxu0 %v611
    %v613 = vand.u32 %v37, 4294901760
    %614 = vmatpush.msra.mxu0 %v613
    %v615 = vand.u32 %v36, 4294901760
    %616 = vmatpush.msra.mxu0 %v615
    %v617 = vand.u32 %v35, 4294901760
    %618 = vmatpush.msra.mxu0 %v617
    %v619 = vand.u32 %v34, 4294901760
    %620 = vmatpush.msra.mxu0 %v619
    %v621 = vand.u32 %v392, 4294901760
    %v622 = vsub.f32 %v392, %v621
    %v623 = vand.u32 %v622, 4294901760
    %624 = vmatmul.f32.gmra.mxu0 %v623
    %v625 = vpop.f32.mrf.mxu0
    %v626 = vadd.f32 %v587, %v625
    %627 = vdwg.mxu0
    %v628 = vand.u32 %v49, 4294901760
    %v629 = vsub.f32 %v49, %v628
    %v630 = vand.u32 %v629, 4294901760
    %631 = vmatpush.msra.mxu0 %v630
    %v632 = vand.u32 %v48, 4294901760
    %v633 = vsub.f32 %v48, %v632
    %v634 = vand.u32 %v633, 4294901760
    %635 = vmatpush.msra.mxu0 %v634
    %v636 = vand.u32 %v47, 4294901760
    %v637 = vsub.f32 %v47, %v636
    %v638 = vand.u32 %v637, 4294901760
    %639 = vmatpush.msra.mxu0 %v638
    %v640 = vand.u32 %v46, 4294901760
    %v641 = vsub.f32 %v46, %v640
    %v642 = vand.u32 %v641, 4294901760
    %643 = vmatpush.msra.mxu0 %v642
    %v644 = vand.u32 %v45, 4294901760
    %v645 = vsub.f32 %v45, %v644
    %v646 = vand.u32 %v645, 4294901760
    %647 = vmatpush.msra.mxu0 %v646
    %v648 = vand.u32 %v44, 4294901760
    %v649 = vsub.f32 %v44, %v648
    %v650 = vand.u32 %v649, 4294901760
    %651 = vmatpush.msra.mxu0 %v650
    %v652 = vand.u32 %v43, 4294901760
    %v653 = vsub.f32 %v43, %v652
    %v654 = vand.u32 %v653, 4294901760
    %655 = vmatpush.msra.mxu0 %v654
    %v656 = vand.u32 %v42, 4294901760
    %v657 = vsub.f32 %v42, %v656
    %v658 = vand.u32 %v657, 4294901760
    %659 = vmatpush.msra.mxu0 %v658
    %v660 = vand.u32 %v41, 4294901760
    %v661 = vsub.f32 %v41, %v660
    %v662 = vand.u32 %v661, 4294901760
    %663 = vmatpush.msra.mxu0 %v662
    %v664 = vand.u32 %v40, 4294901760
    %v665 = vsub.f32 %v40, %v664
    %v666 = vand.u32 %v665, 4294901760
    %667 = vmatpush.msra.mxu0 %v666
    %v668 = vand.u32 %v39, 4294901760
    %v669 = vsub.f32 %v39, %v668
    %v670 = vand.u32 %v669, 4294901760
    %671 = vmatpush.msra.mxu0 %v670
    %v672 = vand.u32 %v38, 4294901760
    %v673 = vsub.f32 %v38, %v672
    %v674 = vand.u32 %v673, 4294901760
    %675 = vmatpush.msra.mxu0 %v674
    %v676 = vand.u32 %v37, 4294901760
    %v677 = vsub.f32 %v37, %v676
    %v678 = vand.u32 %v677, 4294901760
    %679 = vmatpush.msra.mxu0 %v678
    %v680 = vand.u32 %v36, 4294901760
    %v681 = vsub.f32 %v36, %v680
    %v682 = vand.u32 %v681, 4294901760
    %683 = vmatpush.msra.mxu0 %v682
    %v684 = vand.u32 %v35, 4294901760
    %v685 = vsub.f32 %v35, %v684
    %v686 = vand.u32 %v685, 4294901760
    %687 = vmatpush.msra.mxu0 %v686
    %v688 = vand.u32 %v34, 4294901760
    %v689 = vsub.f32 %v34, %v688
    %v690 = vand.u32 %v689, 4294901760
    %691 = vmatpush.msra.mxu0 %v690
    %v692 = vand.u32 %v392, 4294901760
    %693 = vmatmul.f32.gmra.mxu0 %v692
    %v694 = vpop.f32.mrf.mxu0
    %v695 = vadd.f32 %v626, %v694
    %696 = vdwg.mxu0
    %v697 = vand.u32 %v49, 4294901760
    %698 = vmatpush.msra.mxu0 %v697
    %v699 = vand.u32 %v48, 4294901760
    %700 = vmatpush.msra.mxu0 %v699
    %v701 = vand.u32 %v47, 4294901760
    %702 = vmatpush.msra.mxu0 %v701
    %v703 = vand.u32 %v46, 4294901760
    %704 = vmatpush.msra.mxu0 %v703
    %v705 = vand.u32 %v45, 4294901760
    %706 = vmatpush.msra.mxu0 %v705
    %v707 = vand.u32 %v44, 4294901760
    %708 = vmatpush.msra.mxu0 %v707
    %v709 = vand.u32 %v43, 4294901760
    %710 = vmatpush.msra.mxu0 %v709
    %v711 = vand.u32 %v42, 4294901760
    %712 = vmatpush.msra.mxu0 %v711
    %v713 = vand.u32 %v41, 4294901760
    %714 = vmatpush.msra.mxu0 %v713
    %v715 = vand.u32 %v40, 4294901760
    %716 = vmatpush.msra.mxu0 %v715
    %v717 = vand.u32 %v39, 4294901760
    %718 = vmatpush.msra.mxu0 %v717
    %v719 = vand.u32 %v38, 4294901760
    %720 = vmatpush.msra.mxu0 %v719
    %v721 = vand.u32 %v37, 4294901760
    %722 = vmatpush.msra.mxu0 %v721
    %v723 = vand.u32 %v36, 4294901760
    %724 = vmatpush.msra.mxu0 %v723
    %v725 = vand.u32 %v35, 4294901760
    %726 = vmatpush.msra.mxu0 %v725
    %v727 = vand.u32 %v34, 4294901760
    %728 = vmatpush.msra.mxu0 %v727
    %v729 = vand.u32 %v392, 4294901760
    %730 = vmatmul.f32.gmra.mxu0 %v729
    %v731 = vpop.f32.mrf.mxu0
    %v732 = vadd.f32 %v695, %v731
    %733 = vdwg.mxu0
    %v734 = vrsqrt.pop %v732
    %v735 = vmul.f32 %v734, %v732
    %v736 = vmul.f32 %v735, %v734
    %v737 = vmul.f32 0.5, %v736
    %v738 = vsub.f32 1.5, %v737
    %v739 = vmul.f32 %v734, %v738
    %vm740 = vweird.f32 %v732
    %vm741 = vweird.f32 %v734
    %vm742 = vmor %vm740, %vm741
    %v743 = vsel %vm742, %v734, %v739
    %v744 = vld [vmem:[%s1 + $0x1] sm:$0x1]
    %v745 = vperm.slane %v744, 0
    %v746 = vmul.f32 %v743, %v745
    %v747 = vmul.f32 %v391, %v746
    %v748 = vld [vmem:[%s1 + $0x2] sm:$0x1]
    %v749 = vperm.slane %v748, 0
    %v750 = vadd.f32 %v747, %v749
    %751 = vst [vmem:[%s3] sm:$0x3] %v750
    // Predicated region
    $region18: #{embedding_forward.1} parent=1 // pred_check
      _
    $region19: #{embedding_forward.1} parent=1 // pred_check_branch
      %753 = sbr.rel (0) target = $region21
    $region20: #{embedding_forward.1} parent=1 // pred_region
      _
    $region21: #{embedding_forward.1} parent=1 // pred_fallthru
      _
    // Predicated region
    $region22: #{embedding_forward.1} parent=1 // pred_check
      _
    $region23: #{embedding_forward.1} parent=1 // pred_check_branch
      %755 = sbr.rel (0) target = $region25
    $region24: #{embedding_forward.1} parent=1 // pred_region
      _
    $region25: #{embedding_forward.1} parent=1 // pred_fallthru
      _
    %756 = vsyncpa [#allocation3], 1

</llo_original>
